<compile_context>
chip_gen: v6e
topology: v6e:2x2x1
jax: 0.10.0
libtpu: 0.0.40
codegen_flags: <defaults>
</compile_context>

<pallas_src>
import jax
import jax.numpy as jnp
from jax import lax
from jax.experimental import pallas as pl
from jax.experimental.pallas import tpu as pltpu


def _round_up(x, m):
    return (x + m - 1) // m * m


# ----------------------------- Pallas kernels -----------------------------

def _gemm_kernel(a_ref, b_ref, o_ref):
    a = a_ref[...].astype(jnp.bfloat16)
    o_ref[...] = jnp.dot(a, b_ref[...], preferred_element_type=jnp.float32)


def _gemm_bn_relu_kernel(a_ref, b_ref, scale_ref, shift_ref, o_ref):
    # Fused BatchNorm(scale/shift) + ReLU prologue on the A operand (f32 math),
    # then bf16 MXU matmul with f32 accumulation.
    a = jnp.maximum(a_ref[...] * scale_ref[...] + shift_ref[...], 0.0)
    o_ref[...] = jnp.dot(a.astype(jnp.bfloat16), b_ref[...],
                         preferred_element_type=jnp.float32)


def pallas_gemm(a, b, scale=None, shift=None, tm_max=512):
    """C = act(A) @ B.   A: (M, K) f32,  B: (K, N) f32 (cast to bf16), N % 128 == 0.

    If scale/shift (shape (K,)) are given, act(A) = relu(A * scale + shift) is
    applied in-kernel (fused BN + ReLU prologue).  K and N are kept whole (one
    block each); the grid runs over M only ("parallel")."""
    M, K = a.shape
    K2, N = b.shape
    assert K == K2
    assert N % 128 == 0, "GEMM output width must be lane dense (multiple of 128)"

    Mp = _round_up(M, 8)
    if Mp != M:
        a = jnp.pad(a, ((0, Mp - M), (0, 0)))
    tm = Mp if Mp <= tm_max else tm_max
    assert Mp % tm == 0

    b_bf = b.astype(jnp.bfloat16)
    if scale is None:
        kernel = _gemm_kernel
        operands = (a, b_bf)
        in_specs = [pl.BlockSpec((tm, K), lambda i: (i, 0)),
                    pl.BlockSpec((K, N), lambda i: (0, 0))]
    else:
        kernel = _gemm_bn_relu_kernel
        operands = (a, b_bf,
                    scale.reshape(1, K).astype(jnp.float32),
                    shift.reshape(1, K).astype(jnp.float32))
        in_specs = [pl.BlockSpec((tm, K), lambda i: (i, 0)),
                    pl.BlockSpec((K, N), lambda i: (0, 0)),
                    pl.BlockSpec((1, K), lambda i: (0, 0)),
                    pl.BlockSpec((1, K), lambda i: (0, 0))]

    out = pl.pallas_call(
        kernel,
        out_shape=jax.ShapeDtypeStruct((Mp, N), jnp.float32),
        grid_spec=pltpu.PrefetchScalarGridSpec(
            num_scalar_prefetch=0,
            grid=(Mp // tm,),
            in_specs=in_specs,
            out_specs=pl.BlockSpec((tm, N), lambda i: (i, 0))),
        compiler_params=pltpu.CompilerParams(
            dimension_semantics=("parallel",)),
    )(*operands)
    return out[:M] if Mp != M else out


def _head_kernel(x_ref, b_ref, o_ref):
    # bias add, sigmoid on true channels 0..2 of every 8-channel group,
    # pass-through on channels 3..7 (6, 7 are padding, sliced off outside).
    x = x_ref[...] + b_ref[...]
    ch = jnp.bitwise_and(lax.broadcasted_iota(jnp.int32, x.shape, 1), 7)
    sig = 1.0 / (1.0 + jnp.exp(-x))
    o_ref[...] = jnp.where(ch < 3, sig, x)


def pallas_head(x2d, bias8, tm=256):
    """x2d: (M, 8) activations (channels padded to 8), bias8: (8,).

    Folds 16 pixels per row -> (M/16, 128) so stores are lane dense."""
    M, C = x2d.shape
    assert C == 8 and (M * C) % 128 == 0
    R = (M * C) // 128
    xf = x2d.reshape(R, 128)
    bias_t = jnp.tile(bias8.astype(jnp.float32), 128 // C).reshape(1, 128)
    tm = R if R <= tm else tm
    assert R % tm == 0
    out = pl.pallas_call(
        _head_kernel,
        out_shape=jax.ShapeDtypeStruct((R, 128), jnp.float32),
        grid_spec=pltpu.PrefetchScalarGridSpec(
            num_scalar_prefetch=0,
            grid=(R // tm,),
            in_specs=[pl.BlockSpec((tm, 128), lambda i: (i, 0)),
                      pl.BlockSpec((1, 128), lambda i: (0, 0))],
            out_specs=pl.BlockSpec((tm, 128), lambda i: (i, 0))),
        compiler_params=pltpu.CompilerParams(
            dimension_semantics=("parallel",)),
    )(xf, bias_t)
    return out.reshape(M, C)


# ----------------------------- JAX glue -----------------------------------

def _bn_scale_shift(x2d, gamma, beta, eps=1e-5):
    """Per-channel BN scale/shift from batch statistics (biased variance).

    Single sum / sum-of-squares pass; the normalize + ReLU itself is fused into
    the next layer's Pallas GEMM prologue, so the activation is never
    re-written to HBM just for BN.
    # TODO(synk): the tiny per-channel reduction stays in XLA glue; it could be
    # emitted as extra outputs of the GEMM kernel in a fully fused variant.
    """
    m = x2d.shape[0]
    s1 = jnp.sum(x2d, axis=0)
    s2 = jnp.sum(x2d * x2d, axis=0)
    mean = s1 / m
    var = jnp.maximum(s2 / m - mean * mean, 0.0)
    inv = gamma * lax.rsqrt(var + eps)
    return inv, beta - mean * inv


def _shift_p(x, axis):
    # y[i] = x[i-1], zero at i == 0
    pad = [(0, 0)] * x.ndim
    pad[axis] = (1, 0)
    return lax.slice_in_dim(jnp.pad(x, pad), 0, x.shape[axis], axis=axis)


def _shift_m(x, axis):
    # y[i] = x[i+1], zero at i == size-1
    pad = [(0, 0)] * x.ndim
    pad[axis] = (0, 1)
    return lax.slice_in_dim(jnp.pad(x, pad), 1, x.shape[axis] + 1, axis=axis)


def _overlap_add_s2k4(c6):
    """Overlap-add of per-pixel tap contributions for ConvTranspose2d(4, 2, 1).

    c6: (N, H, W, 4, 4, C), where c6[n, ih, iw, kh, kw, c] contributes to
    output pixel (2*ih - 1 + kh, 2*iw - 1 + kw).  Returns (N, 2H, 2W, C).
    Even output rows gather (kh=1, ih=a) + (kh=3, ih=a-1); odd rows gather
    (kh=2, ih=a) + (kh=0, ih=a+1); same for columns with kw.
    # TODO(synk): candidate for in-VMEM fusion into the GEMM epilogue in a
    # whole-network-resident mega-kernel; kept as dense XLA glue here.
    """
    n, h, w, _, _, c = c6.shape
    r_even = c6[:, :, :, 1, :, :] + _shift_p(c6[:, :, :, 3, :, :], 1)
    r_odd = c6[:, :, :, 2, :, :] + _shift_m(c6[:, :, :, 0, :, :], 1)
    rows = []
    for r in (r_even, r_odd):
        p0 = r[:, :, :, 1, :] + _shift_p(r[:, :, :, 3, :], 2)
        p1 = r[:, :, :, 2, :] + _shift_m(r[:, :, :, 0, :], 2)
        rows.append(jnp.stack([p0, p1], axis=3))          # (N, H, W, 2, C)
    out = jnp.stack(rows, axis=2)                         # (N, H, 2, W, 2, C)
    return out.reshape(n, 2 * h, 2 * w, c)


def _convT_s2p1k4(x_nhwc, w_t, scale, shift):
    """ConvTranspose2d(k=4, s=2, p=1) as scatter-GEMM with fused BN+ReLU prologue.

    x_nhwc: (N, H, W, Cin) raw (un-normalized) activations.
    w_t:    PyTorch layout (Cin, Cout, 4, 4).
    Returns ((N, 2H, 2W, Cout_pad), Cout) with Cout padded to a multiple of 8.
    """
    n, h, w, cin = x_nhwc.shape
    cout = w_t.shape[1]
    cpad = (-cout) % 8
    if cpad:
        w_t = jnp.pad(w_t, ((0, 0), (0, cpad), (0, 0), (0, 0)))
    cout_p = cout + cpad
    wm = jnp.transpose(w_t, (0, 2, 3, 1)).reshape(cin, 16 * cout_p)
    c2d = pallas_gemm(x_nhwc.reshape(n * h * w, cin), wm, scale, shift)
    y = _overlap_add_s2k4(c2d.reshape(n, h, w, 4, 4, cout_p))
    return y, cout


def dcgan_forward(z, p):
    n = z.shape[0]
    z2 = z.reshape(n, -1).astype(jnp.float32)
    nz = z2.shape[1]

    # Layer 1: ConvTranspose2d(nz, c1, 4, 1, 0) on a 1x1 input == plain GEMM.
    # Weight is pre-transposed so the GEMM output is directly NHWC.
    w1 = p["w1"]                                           # (nz, c1, 4, 4)
    c1 = w1.shape[1]
    w1m = jnp.transpose(w1, (0, 2, 3, 1)).reshape(nz, 16 * c1)
    h = pallas_gemm(z2, w1m).reshape(n, 4, 4, c1)          # un-normalized NHWC
    scale, shift = _bn_scale_shift(h.reshape(-1, c1), p["g1"], p["b1"])

    # Layers 2-4: ConvTranspose2d(4, 2, 1); BN+ReLU of the *previous* layer is
    # applied inside the GEMM prologue, so activations cross HBM only once.
    for w, g, b in ((p["w2"], p["g2"], p["b2"]),
                    (p["w3"], p["g3"], p["b3"]),
                    (p["w4"], p["g4"], p["b4"])):
        h, cout = _convT_s2p1k4(h, w, scale, shift)
        h = h[..., :cout]                                  # no-op when unpadded
        scale, shift = _bn_scale_shift(h.reshape(-1, cout), g, b)

    # Layer 5: ConvTranspose2d(ngf, 6, 4, 2, 1) with bias, then sigmoid head.
    y, cout5 = _convT_s2p1k4(h, p["w5"], scale, shift)     # (N, 64, 64, 8)
    ho, wo, cp = y.shape[1], y.shape[2], y.shape[3]
    bias8 = jnp.pad(p["bias5"], (0, cp - cout5))
    out = pallas_head(y.reshape(n * ho * wo, cp), bias8)
    out = out.reshape(n, ho, wo, cp)[..., :cout5].transpose(0, 3, 1, 2)  # NCHW
    return out[:, 0:3], out[:, 3:6]                        # (means, scales)


def init_params(key, nz=64, ngf=8, nc=6):
    c = [nz, ngf * 8, ngf * 4, ngf * 2, ngf, nc]
    ks = jax.random.split(key, 10)
    p = {}
    for i in range(5):
        p[f"w{i+1}"] = 0.02 * jax.random.normal(
            ks[i], (c[i], c[i + 1], 4, 4), jnp.float32)
    for i in range(4):
        p[f"g{i+1}"] = 1.0 + 0.02 * jax.random.normal(
            ks[5 + i], (c[i + 1],), jnp.float32)
        p[f"b{i+1}"] = jnp.zeros((c[i + 1],), jnp.float32)
    p["bias5"] = 0.02 * jax.random.normal(ks[9], (nc,), jnp.float32)
    return p


# ------------------------- pure-JAX reference ------------------------------

def _ref_convT(x_nchw, w_t, stride, pad):
    N, Cin, H, W = x_nchw.shape
    Cout, K = w_t.shape[1], w_t.shape[2]
    Ho = (H - 1) * stride - 2 * pad + K
    Wo = (W - 1) * stride - 2 * pad + K
    full = jnp.zeros((N, Cout, (H - 1) * stride + K, (W - 1) * stride + K),
                     jnp.float32)
    contrib = jnp.einsum("nihw,iokl->noklhw", x_nchw, w_t, precision="highest")
    for kh in range(K):
        for kw in range(K):
            full = full.at[:, :, kh:kh + (H - 1) * stride + 1:stride,
                           kw:kw + (W - 1) * stride + 1:stride].add(
                contrib[:, :, kh, kw])
    return full[:, :, pad:pad + Ho, pad:pad + Wo]


def _ref_bn_relu(x, gamma, beta, eps=1e-5):
    mean = jnp.mean(x, axis=(0, 2, 3), keepdims=True)
    var = jnp.mean(jnp.square(x - mean), axis=(0, 2, 3), keepdims=True)
    xn = (x - mean) * lax.rsqrt(var + eps)
    return jnp.maximum(xn * gamma.reshape(1, -1, 1, 1)
                       + beta.reshape(1, -1, 1, 1), 0.0)


def dcgan_reference(z, p):
    N = z.shape[0]
    x = z.reshape(N, -1, 1, 1)
    x = _ref_bn_relu(_ref_convT(x, p["w1"], 1, 0), p["g1"], p["b1"])
    for i in (2, 3, 4):
        x = _ref_bn_relu(_ref_convT(x, p[f"w{i}"], 2, 1), p[f"g{i}"], p[f"b{i}"])
    x = _ref_convT(x, p["w5"], 2, 1) + p["bias5"].reshape(1, -1, 1, 1)
    return jax.nn.sigmoid(x[:, 0:3]), x[:, 3:6]


# ------------------------------- main ---------------------------------------

if __name__ == "__main__":
    NZ, NGF, NC, BATCH = 64, 8, 6, 2
    key = jax.random.PRNGKey(0)
    kz, kp = jax.random.split(key)
    params = init_params(kp, nz=NZ, ngf=NGF, nc=NC)
    z = jax.random.normal(kz, (BATCH, NZ, 1, 1), jnp.float32)

    means, scales = dcgan_forward(z, params)
    means = jax.block_until_ready(means)
    scales = jax.block_until_ready(scales)

    assert means.shape == (BATCH, 3, 64, 64)
    assert scales.shape == (BATCH, 3, 64, 64)
    assert bool(jnp.all(jnp.isfinite(means))) and bool(jnp.all(jnp.isfinite(scales)))

    r_means, r_scales = dcgan_reference(z, params)
    assert bool(jnp.allclose(means, r_means, rtol=5e-2, atol=5e-2))
    assert bool(jnp.allclose(scales, r_scales, rtol=5e-2, atol=5e-2))

    print("KERNEL_OK")
</pallas_src>

<mosaic_0001>
module attributes {stable_mosaic.version = 11 : i64} {
  func.func @_gemm_kernel(%arg0: i32, %arg1: memref<8x64xf32, #tpu.memory_space<vmem>>, %arg2: memref<64x1024xbf16, #tpu.memory_space<vmem>>, %arg3: memref<8x1024xf32, #tpu.memory_space<vmem>>) attributes {dimension_semantics = [#tpu.dimension_semantics<parallel>], iteration_bounds = array<i64: 1>, scalar_prefetch = 0 : i64, scratch_operands = 0 : i64, tpu.core_type = #tpu.core_type<tc>, window_params = [{transform_indices = @transform_0, window_bounds = array<i64: 8, 64>}, {pipeline_mode = #tpu.pipeline_mode<synchronous>, transform_indices = @transform_1, window_bounds = array<i64: 64, 1024>}, {transform_indices = @transform_2, window_bounds = array<i64: 8, 1024>}]} {
    %c0 = arith.constant 0 : index
    %c0_0 = arith.constant 0 : index
    %0 = vector.load %arg1[%c0, %c0_0] : memref<8x64xf32, #tpu.memory_space<vmem>>, vector<8x64xf32>
    %1 = arith.truncf %0 : vector<8x64xf32> to vector<8x64xbf16>
    %c0_1 = arith.constant 0 : index
    %c0_2 = arith.constant 0 : index
    %2 = vector.load %arg2[%c0_1, %c0_2] : memref<64x1024xbf16, #tpu.memory_space<vmem>>, vector<64x1024xbf16>
    %cst = arith.constant dense<0.000000e+00> : vector<8x1024xf32>
    %3 = tpu.matmul %1, %2, %cst {dimension_numbers = #tpu.dot_dimension_numbers<[1], [0], [0], [1], [0, 0, 1, 1], [], []>} : vector<8x64xbf16>, vector<64x1024xbf16>, vector<8x1024xf32> -> vector<8x1024xf32>
    %c0_3 = arith.constant 0 : index
    %c0_4 = arith.constant 0 : index
    %4 = vector.load %arg3[%c0_3, %c0_4] : memref<8x1024xf32, #tpu.memory_space<vmem>>, vector<8x1024xf32>
    tpu.vector_store %arg3[%c0_3, %c0_4], %3 {strides = array<i32>} : memref<8x1024xf32, #tpu.memory_space<vmem>>, vector<8x1024xf32>,
    return
  }
  func.func @transform_0(%arg0: i32) -> (i32, i32) {
    %c0_i32 = arith.constant 0 : i32
    %c0_i32_0 = arith.constant 0 : i32
    return %arg0, %c0_i32 : i32, i32
  }
  func.func @transform_1(%arg0: i32) -> (i32, i32) {
    %c0_i32 = arith.constant 0 : i32
    %c0_i32_0 = arith.constant 0 : i32
    %c0_i32_1 = arith.constant 0 : i32
    return %c0_i32, %c0_i32_0 : i32, i32
  }
  func.func @transform_2(%arg0: i32) -> (i32, i32) {
    %c0_i32 = arith.constant 0 : i32
    %c0_i32_0 = arith.constant 0 : i32
    return %arg0, %c0_i32 : i32, i32
  }
}

</mosaic_0001>

<llo_original>
// kernel: tpu_custom_call.1
$region0: #{tpu_custom_call.1}
  #allocation0 [shape = 'u32[]', space=smem, size = 0x4, offset = 0x4, fixed_abs, tag = 'smem constant byte address 0x4 - core index']
  #allocation1 [shape = 'u32[144,128]{1,0:T(1,128)}', space=vmem, size = 0x12000, scoped, tag = 'internal scratch']
  %s0 = inlined_call_operand.hbm [shape: f32[8,64], index: 0, kind: input, shape index: {}]
  %s1 = inlined_call_operand.hbm [shape: bf16[64,1024], index: 1, kind: input, shape index: {}]
  %s2 = inlined_call_operand.hbm [shape: f32[8,1024], index: 2, kind: output, shape index: {}]
  %s3 = sld [smem:[#allocation0]]
  $region26: #{tpu_custom_call.1} parent=0
    _
  %s5 = ssub.s32 1, %s3
  %s6 = scalar_select 0, %s5, %s3
  $region1: #{tpu_custom_call.1} parent=0
    #allocation2 [shape = 'u8[4096]{0}', space=vmem, size = 0x1000, scoped, tag = 'input window, operand 0, single buffered']
    #allocation3 [shape = 's32[1]{0}', space=sflag, size = 0x4, scoped, tag = 'scoped memory for tpu_custom_call.1']
    #allocation4 [shape = 's32[1]{0}', space=sflag, size = 0x4, scoped, tag = 'scoped memory for tpu_custom_call.1']
    #allocation5 [shape = 'u8[131072]{0}', space=vmem, size = 0x20000, scoped, tag = 'input window, operand 1, single buffered']
    #allocation6 [shape = 's32[1]{0}', space=sflag, size = 0x4, scoped, tag = 'scoped memory for tpu_custom_call.1']
    #allocation7 [shape = 'u8[32768]{0}', space=vmem, size = 0x8000, scoped, tag = 'output window, operand 0, single buffered']
    %7 = vsyncpa [#allocation3], 0
    %8 = vsyncpa [#allocation6], 0
    %9 = vsyncpa [#allocation4], 0
    // Predicated region
    $region2: #{tpu_custom_call.1} parent=1 // pred_check
      _
    $region3: #{tpu_custom_call.1} parent=1 // pred_check_branch
      %11 = sbr.rel (0) target = $region5
    $region4: #{tpu_custom_call.1} parent=1 // pred_region
      %s13 = ssub.s32 128, 128
      %14 = vsyncadd [#allocation3], %s13
      %s16 = sshll.u32 [#allocation2], 4
      %s17 = int_to_ptr.vmem [resolvable:$true] %s16
      %19 = dma.hbm_to_vmem [thread:$0]  %s0, 128, %s17, [#allocation3]
    $region5: #{tpu_custom_call.1} parent=1 // pred_fallthru
      _
    // Predicated region
    $region6: #{tpu_custom_call.1} parent=1 // pred_check
      _
    $region7: #{tpu_custom_call.1} parent=1 // pred_check_branch
      %21 = sbr.rel (0) target = $region9
    $region8: #{tpu_custom_call.1} parent=1 // pred_region
      %s23 = ssub.s32 4096, 4096
      %24 = vsyncadd [#allocation6], %s23
      %s25 = sshll.u32 [#allocation5], 4
      %s26 = int_to_ptr.vmem [resolvable:$true] %s25
      %31 = dma.hbm_to_vmem [thread:$0]  %s1, 4096, %s26, [#allocation6], 512, 512, 32
    $region9: #{tpu_custom_call.1} parent=1 // pred_fallthru
      _
    // Predicated region
    $region10: #{tpu_custom_call.1} parent=1 // pred_check
      _
    $region11: #{tpu_custom_call.1} parent=1 // pred_check_branch
      %33 = sbr.rel (0) target = $region13
    $region12: #{tpu_custom_call.1} parent=1 // pred_region
      %34 = dma.done [#allocation3], 128
    $region13: #{tpu_custom_call.1} parent=1 // pred_fallthru
      _
    // Predicated region
    $region14: #{tpu_custom_call.1} parent=1 // pred_check
      _
    $region15: #{tpu_custom_call.1} parent=1 // pred_check_branch
      %36 = sbr.rel (0) target = $region17
    $region16: #{tpu_custom_call.1} parent=1 // pred_region
      %37 = dma.done [#allocation6], 4096
    $region17: #{tpu_custom_call.1} parent=1 // pred_fallthru
      _
    %v39 = vld [vmem:[#allocation2] sm:$0xff]
    %v40 = vpack.c.bf16 %v39, %v39
    %v41 = vld [vmem:[#allocation5] sm:$0xff]
    %v42 = vld [vmem:[#allocation5 + $0x8] sm:$0xff]
    %v43 = vld [vmem:[#allocation5 + $0x10] sm:$0xff]
    %v44 = vld [vmem:[#allocation5 + $0x18] sm:$0xff]
    %v45 = vld [vmem:[#allocation5 + $0x20] sm:$0xff]
    %v46 = vld [vmem:[#allocation5 + $0x28] sm:$0xff]
    %v47 = vld [vmem:[#allocation5 + $0x30] sm:$0xff]
    %v48 = vld [vmem:[#allocation5 + $0x38] sm:$0xff]
    %v49 = vld [vmem:[#allocation5 + $0x40] sm:$0xff]
    %v50 = vld [vmem:[#allocation5 + $0x48] sm:$0xff]
    %v51 = vld [vmem:[#allocation5 + $0x50] sm:$0xff]
    %v52 = vld [vmem:[#allocation5 + $0x58] sm:$0xff]
    %v53 = vld [vmem:[#allocation5 + $0x60] sm:$0xff]
    %v54 = vld [vmem:[#allocation5 + $0x68] sm:$0xff]
    %v55 = vld [vmem:[#allocation5 + $0x70] sm:$0xff]
    %v56 = vld [vmem:[#allocation5 + $0x78] sm:$0xff]
    %v57 = vld [vmem:[#allocation5 + $0x80] sm:$0xff]
    %v58 = vld [vmem:[#allocation5 + $0x88] sm:$0xff]
    %v59 = vld [vmem:[#allocation5 + $0x90] sm:$0xff]
    %v60 = vld [vmem:[#allocation5 + $0x98] sm:$0xff]
    %v61 = vld [vmem:[#allocation5 + $0xa0] sm:$0xff]
    %v62 = vld [vmem:[#allocation5 + $0xa8] sm:$0xff]
    %v63 = vld [vmem:[#allocation5 + $0xb0] sm:$0xff]
    %v64 = vld [vmem:[#allocation5 + $0xb8] sm:$0xff]
    %v65 = vld [vmem:[#allocation5 + $0xc0] sm:$0xff]
    %v66 = vld [vmem:[#allocation5 + $0xc8] sm:$0xff]
    %v67 = vld [vmem:[#allocation5 + $0xd0] sm:$0xff]
    %v68 = vld [vmem:[#allocation5 + $0xd8] sm:$0xff]
    %v69 = vld [vmem:[#allocation5 + $0xe0] sm:$0xff]
    %v70 = vld [vmem:[#allocation5 + $0xe8] sm:$0xff]
    %v71 = vld [vmem:[#allocation5 + $0xf0] sm:$0xff]
    %v72 = vld [vmem:[#allocation5 + $0xf8] sm:$0xff]
    %v105 = vunpack.c.l.b16 %v41
    %v106 = vunpack.c.h.b16 %v41
    %v107 = vunpack.c.l.b16 %v42
    %v108 = vunpack.c.h.b16 %v42
    %v109 = vunpack.c.l.b16 %v43
    %v110 = vunpack.c.h.b16 %v43
    %v111 = vunpack.c.l.b16 %v44
    %v112 = vunpack.c.h.b16 %v44
    %v113 = vunpack.c.l.b16 %v45
    %v114 = vunpack.c.h.b16 %v45
    %v115 = vunpack.c.l.b16 %v46
    %v116 = vunpack.c.h.b16 %v46
    %v117 = vunpack.c.l.b16 %v47
    %v118 = vunpack.c.h.b16 %v47
    %v119 = vunpack.c.l.b16 %v48
    %v120 = vunpack.c.h.b16 %v48
    %v121 = vunpack.c.l.b16 %v49
    %v122 = vunpack.c.h.b16 %v49
    %v123 = vunpack.c.l.b16 %v50
    %v124 = vunpack.c.h.b16 %v50
    %v125 = vunpack.c.l.b16 %v51
    %v126 = vunpack.c.h.b16 %v51
    %v127 = vunpack.c.l.b16 %v52
    %v128 = vunpack.c.h.b16 %v52
    %v129 = vunpack.c.l.b16 %v53
    %v130 = vunpack.c.h.b16 %v53
    %v131 = vunpack.c.l.b16 %v54
    %v132 = vunpack.c.h.b16 %v54
    %v133 = vunpack.c.l.b16 %v55
    %v134 = vunpack.c.h.b16 %v55
    %v135 = vunpack.c.l.b16 %v56
    %v136 = vunpack.c.h.b16 %v56
    %v137 = vunpack.c.l.b16 %v57
    %v138 = vunpack.c.h.b16 %v57
    %v139 = vunpack.c.l.b16 %v58
    %v140 = vunpack.c.h.b16 %v58
    %v141 = vunpack.c.l.b16 %v59
    %v142 = vunpack.c.h.b16 %v59
    %v143 = vunpack.c.l.b16 %v60
    %v144 = vunpack.c.h.b16 %v60
    %v145 = vunpack.c.l.b16 %v61
    %v146 = vunpack.c.h.b16 %v61
    %v147 = vunpack.c.l.b16 %v62
    %v148 = vunpack.c.h.b16 %v62
    %v149 = vunpack.c.l.b16 %v63
    %v150 = vunpack.c.h.b16 %v63
    %v151 = vunpack.c.l.b16 %v64
    %v152 = vunpack.c.h.b16 %v64
    %v153 = vunpack.c.l.b16 %v65
    %v154 = vunpack.c.h.b16 %v65
    %v155 = vunpack.c.l.b16 %v66
    %v156 = vunpack.c.h.b16 %v66
    %v157 = vunpack.c.l.b16 %v67
    %v158 = vunpack.c.h.b16 %v67
    %v159 = vunpack.c.l.b16 %v68
    %v160 = vunpack.c.h.b16 %v68
    %v161 = vunpack.c.l.b16 %v69
    %v162 = vunpack.c.h.b16 %v69
    %v163 = vunpack.c.l.b16 %v70
    %v164 = vunpack.c.h.b16 %v70
    %v165 = vunpack.c.l.b16 %v71
    %v166 = vunpack.c.h.b16 %v71
    %v167 = vunpack.c.l.b16 %v72
    %v168 = vunpack.c.h.b16 %v72
    %v169 = vpack.c.b16 %v113, %v105
    %v170 = vpack.c.b16 %v114, %v106
    %v171 = vpack.c.b16 %v115, %v107
    %v172 = vpack.c.b16 %v116, %v108
    %v173 = vpack.c.b16 %v117, %v109
    %v174 = vpack.c.b16 %v118, %v110
    %v175 = vpack.c.b16 %v119, %v111
    %v176 = vpack.c.b16 %v120, %v112
    %v177 = vpack.c.b16 %v129, %v121
    %v178 = vpack.c.b16 %v130, %v122
    %v179 = vpack.c.b16 %v131, %v123
    %v180 = vpack.c.b16 %v132, %v124
    %v181 = vpack.c.b16 %v133, %v125
    %v182 = vpack.c.b16 %v134, %v126
    %v183 = vpack.c.b16 %v135, %v127
    %v184 = vpack.c.b16 %v136, %v128
    %v185 = vpack.c.b16 %v145, %v137
    %v186 = vpack.c.b16 %v146, %v138
    %v187 = vpack.c.b16 %v147, %v139
    %v188 = vpack.c.b16 %v148, %v140
    %v189 = vpack.c.b16 %v149, %v141
    %v190 = vpack.c.b16 %v150, %v142
    %v191 = vpack.c.b16 %v151, %v143
    %v192 = vpack.c.b16 %v152, %v144
    %v193 = vpack.c.b16 %v161, %v153
    %v194 = vpack.c.b16 %v162, %v154
    %v195 = vpack.c.b16 %v163, %v155
    %v196 = vpack.c.b16 %v164, %v156
    %v197 = vpack.c.b16 %v165, %v157
    %v198 = vpack.c.b16 %v166, %v158
    %v199 = vpack.c.b16 %v167, %v159
    %v200 = vpack.c.b16 %v168, %v160
    %vm233 = vcmask 523264
    %v235 = vsel %vm233, %v40, 0
    %237 = vmatprep.subr.bf16.mxu0 0
    %238 = vmatpush1.bf16.msra.mxu0 0
    %239 = vmatprep.subr.bf16.mxu0 0
    %240 = vmatpush1.bf16.msra.mxu0 0
    %241 = vmatprep.subr.bf16.mxu0 0
    %242 = vmatpush1.bf16.msra.mxu0 0
    %243 = vmatprep.subr.bf16.mxu0 0
    %244 = vmatpush1.bf16.msra.mxu0 0
    %245 = vmatprep.subr.bf16.mxu0 %v194
    %246 = vmatpush1.bf16.msra.mxu0 %v193
    %247 = vmatprep.subr.bf16.mxu0 %v186
    %248 = vmatpush1.bf16.msra.mxu0 %v185
    %249 = vmatprep.subr.bf16.mxu0 %v178
    %250 = vmatpush1.bf16.msra.mxu0 %v177
    %251 = vmatprep.subr.bf16.mxu0 %v170
    %252 = vmatpush1.bf16.msra.mxu0 %v169
    %253 = vmatprep.subr.bf16.mxu0 0
    %254 = vmatpush2.bf16.msra.mxu0 0
    %255 = vmatprep.subr.bf16.mxu0 0
    %256 = vmatpush2.bf16.msra.mxu0 0
    %257 = vmatprep.subr.bf16.mxu0 0
    %258 = vmatpush2.bf16.msra.mxu0 0
    %259 = vmatprep.subr.bf16.mxu0 0
    %260 = vmatpush2.bf16.msra.mxu0 0
    %261 = vmatprep.subr.bf16.mxu0 0
    %262 = vmatpush2.bf16.msra.mxu0 0
    %263 = vmatprep.subr.bf16.mxu0 0
    %264 = vmatpush2.bf16.msra.mxu0 0
    %265 = vmatprep.subr.bf16.mxu0 0
    %266 = vmatpush2.bf16.msra.mxu0 0
    %267 = vmatprep.subr.bf16.mxu0 0
    %268 = vmatpush2.bf16.msra.mxu0 0
    %269 = vmatprep.mubr.bf16.mxu0 0
    %270 = vmatmul.mubr.bf16.gmra.mxu0 %v235
    %v271 = vpop.f32.mrf.mxu0
    %v272 = vadd.f32 0.0, %v271
    %v273 = vpop.f32.mrf.mxu0
    %v274 = vadd.f32 0.0, %v273
    %v275 = vpop.f32.mrf.mxu0
    %v276 = vpop.f32.mrf.mxu0
    %277 = vdwg.mxu0
    %278 = vmatprep.subr.bf16.mxu0 0
    %279 = vmatpush1.bf16.msra.mxu0 0
    %280 = vmatprep.subr.bf16.mxu0 0
    %281 = vmatpush1.bf16.msra.mxu0 0
    %282 = vmatprep.subr.bf16.mxu0 0
    %283 = vmatpush1.bf16.msra.mxu0 0
    %284 = vmatprep.subr.bf16.mxu0 0
    %285 = vmatpush1.bf16.msra.mxu0 0
    %286 = vmatprep.subr.bf16.mxu0 %v196
    %287 = vmatpush1.bf16.msra.mxu0 %v195
    %288 = vmatprep.subr.bf16.mxu0 %v188
    %289 = vmatpush1.bf16.msra.mxu0 %v187
    %290 = vmatprep.subr.bf16.mxu0 %v180
    %291 = vmatpush1.bf16.msra.mxu0 %v179
    %292 = vmatprep.subr.bf16.mxu0 %v172
    %293 = vmatpush1.bf16.msra.mxu0 %v171
    %294 = vmatprep.subr.bf16.mxu0 0
    %295 = vmatpush2.bf16.msra.mxu0 0
    %296 = vmatprep.subr.bf16.mxu0 0
    %297 = vmatpush2.bf16.msra.mxu0 0
    %298 = vmatprep.subr.bf16.mxu0 0
    %299 = vmatpush2.bf16.msra.mxu0 0
    %300 = vmatprep.subr.bf16.mxu0 0
    %301 = vmatpush2.bf16.msra.mxu0 0
    %302 = vmatprep.subr.bf16.mxu0 0
    %303 = vmatpush2.bf16.msra.mxu0 0
    %304 = vmatprep.subr.bf16.mxu0 0
    %305 = vmatpush2.bf16.msra.mxu0 0
    %306 = vmatprep.subr.bf16.mxu0 0
    %307 = vmatpush2.bf16.msra.mxu0 0
    %308 = vmatprep.subr.bf16.mxu0 0
    %309 = vmatpush2.bf16.msra.mxu0 0
    %310 = vmatprep.mubr.bf16.mxu0 0
    %311 = vmatmul.mubr.bf16.gmra.mxu0 %v235
    %v312 = vpop.f32.mrf.mxu0
    %v313 = vadd.f32 0.0, %v312
    %v314 = vpop.f32.mrf.mxu0
    %v315 = vadd.f32 0.0, %v314
    %v316 = vpop.f32.mrf.mxu0
    %v317 = vpop.f32.mrf.mxu0
    %318 = vdwg.mxu0
    %319 = vmatprep.subr.bf16.mxu0 0
    %320 = vmatpush1.bf16.msra.mxu0 0
    %321 = vmatprep.subr.bf16.mxu0 0
    %322 = vmatpush1.bf16.msra.mxu0 0
    %323 = vmatprep.subr.bf16.mxu0 0
    %324 = vmatpush1.bf16.msra.mxu0 0
    %325 = vmatprep.subr.bf16.mxu0 0
    %326 = vmatpush1.bf16.msra.mxu0 0
    %327 = vmatprep.subr.bf16.mxu0 %v198
    %328 = vmatpush1.bf16.msra.mxu0 %v197
    %329 = vmatprep.subr.bf16.mxu0 %v190
    %330 = vmatpush1.bf16.msra.mxu0 %v189
    %331 = vmatprep.subr.bf16.mxu0 %v182
    %332 = vmatpush1.bf16.msra.mxu0 %v181
    %333 = vmatprep.subr.bf16.mxu0 %v174
    %334 = vmatpush1.bf16.msra.mxu0 %v173
    %335 = vmatprep.subr.bf16.mxu0 0
    %336 = vmatpush2.bf16.msra.mxu0 0
    %337 = vmatprep.subr.bf16.mxu0 0
    %338 = vmatpush2.bf16.msra.mxu0 0
    %339 = vmatprep.subr.bf16.mxu0 0
    %340 = vmatpush2.bf16.msra.mxu0 0
    %341 = vmatprep.subr.bf16.mxu0 0
    %342 = vmatpush2.bf16.msra.mxu0 0
    %343 = vmatprep.subr.bf16.mxu0 0
    %344 = vmatpush2.bf16.msra.mxu0 0
    %345 = vmatprep.subr.bf16.mxu0 0
    %346 = vmatpush2.bf16.msra.mxu0 0
    %347 = vmatprep.subr.bf16.mxu0 0
    %348 = vmatpush2.bf16.msra.mxu0 0
    %349 = vmatprep.subr.bf16.mxu0 0
    %350 = vmatpush2.bf16.msra.mxu0 0
    %351 = vmatprep.mubr.bf16.mxu0 0
    %352 = vmatmul.mubr.bf16.gmra.mxu0 %v235
    %v353 = vpop.f32.mrf.mxu0
    %v354 = vadd.f32 0.0, %v353
    %v355 = vpop.f32.mrf.mxu0
    %v356 = vadd.f32 0.0, %v355
    %v357 = vpop.f32.mrf.mxu0
    %v358 = vpop.f32.mrf.mxu0
    %359 = vdwg.mxu0
    %360 = vmatprep.subr.bf16.mxu0 0
    %361 = vmatpush1.bf16.msra.mxu0 0
    %362 = vmatprep.subr.bf16.mxu0 0
    %363 = vmatpush1.bf16.msra.mxu0 0
    %364 = vmatprep.subr.bf16.mxu0 0
    %365 = vmatpush1.bf16.msra.mxu0 0
    %366 = vmatprep.subr.bf16.mxu0 0
    %367 = vmatpush1.bf16.msra.mxu0 0
    %368 = vmatprep.subr.bf16.mxu0 %v200
    %369 = vmatpush1.bf16.msra.mxu0 %v199
    %370 = vmatprep.subr.bf16.mxu0 %v192
    %371 = vmatpush1.bf16.msra.mxu0 %v191
    %372 = vmatprep.subr.bf16.mxu0 %v184
    %373 = vmatpush1.bf16.msra.mxu0 %v183
    %374 = vmatprep.subr.bf16.mxu0 %v176
    %375 = vmatpush1.bf16.msra.mxu0 %v175
    %376 = vmatprep.subr.bf16.mxu0 0
    %377 = vmatpush2.bf16.msra.mxu0 0
    %378 = vmatprep.subr.bf16.mxu0 0
    %379 = vmatpush2.bf16.msra.mxu0 0
    %380 = vmatprep.subr.bf16.mxu0 0
    %381 = vmatpush2.bf16.msra.mxu0 0
    %382 = vmatprep.subr.bf16.mxu0 0
    %383 = vmatpush2.bf16.msra.mxu0 0
    %384 = vmatprep.subr.bf16.mxu0 0
    %385 = vmatpush2.bf16.msra.mxu0 0
    %386 = vmatprep.subr.bf16.mxu0 0
    %387 = vmatpush2.bf16.msra.mxu0 0
    %388 = vmatprep.subr.bf16.mxu0 0
    %389 = vmatpush2.bf16.msra.mxu0 0
    %390 = vmatprep.subr.bf16.mxu0 0
    %391 = vmatpush2.bf16.msra.mxu0 0
    %392 = vmatprep.mubr.bf16.mxu0 0
    %393 = vmatmul.mubr.bf16.gmra.mxu0 %v235
    %v394 = vpop.f32.mrf.mxu0
    %v395 = vadd.f32 0.0, %v394
    %v396 = vpop.f32.mrf.mxu0
    %v397 = vadd.f32 0.0, %v396
    %v398 = vpop.f32.mrf.mxu0
    %v399 = vpop.f32.mrf.mxu0
    %400 = vdwg.mxu0
    %401 = vst [vmem:[#allocation7] sm:$0xff] %v272
    %402 = vst [vmem:[#allocation7 + $0x8] sm:$0xff] %v274
    %403 = vst [vmem:[#allocation7 + $0x10] sm:$0xff] %v313
    %404 = vst [vmem:[#allocation7 + $0x18] sm:$0xff] %v315
    %405 = vst [vmem:[#allocation7 + $0x20] sm:$0xff] %v354
    %406 = vst [vmem:[#allocation7 + $0x28] sm:$0xff] %v356
    %407 = vst [vmem:[#allocation7 + $0x30] sm:$0xff] %v395
    %408 = vst [vmem:[#allocation7 + $0x38] sm:$0xff] %v397
    // Predicated region
    $region18: #{tpu_custom_call.1} parent=1 // pred_check
      _
    $region19: #{tpu_custom_call.1} parent=1 // pred_check_branch
      %410 = sbr.rel (0) target = $region21
    $region20: #{tpu_custom_call.1} parent=1 // pred_region
      %s412 = ssub.s32 1024, 1024
      %413 = vsyncadd [#allocation4], %s412
      %s415 = sshll.u32 [#allocation7], 4
      %s416 = int_to_ptr.vmem [resolvable:$true] %s415
      %418 = dma.vmem_to_hbm [thread:$0]  %s416, 1024, %s2, [#allocation4]
    $region21: #{tpu_custom_call.1} parent=1 // pred_fallthru
      _
    // Predicated region
    $region22: #{tpu_custom_call.1} parent=1 // pred_check
      _
    $region23: #{tpu_custom_call.1} parent=1 // pred_check_branch
      %420 = sbr.rel (0) target = $region25
    $region24: #{tpu_custom_call.1} parent=1 // pred_region
      %421 = dma.done [#allocation4], 1024
    $region25: #{tpu_custom_call.1} parent=1 // pred_fallthru
      _
    %422 = vsyncpa [#allocation3], 1
    %423 = vsyncpa [#allocation6], 1
    %424 = vsyncpa [#allocation4], 1

</llo_original>
